<compile_context>
chip_gen: v7x
topology: tpu7x:2x2x1
jax: 0.10.0
libtpu: 0.0.40
codegen_flags: <defaults>
</compile_context>

<pallas_src>
import jax
import jax.numpy as jnp
import numpy as np
from jax.experimental import pallas as pl
from jax.experimental.pallas import tpu as pltpu

_LANES = 128
_SUBLANES = 8
_MAX_BLOCK_ROWS = 2048          # 2048 x 128 f32 = 1 MiB per block
_VMEM_LIMIT = 32 * 1024 * 1024  # safe on v5e/v6e/v7x


def _to_lane_dense_2d(x, max_block_rows=_MAX_BLOCK_ROWS):
    """Flatten x, zero-pad, reshape to (rows, 128) with rows % block_rows == 0."""
    total = int(np.prod(x.shape))
    rows = pl.cdiv(total, _LANES)
    rows = pl.cdiv(rows, _SUBLANES) * _SUBLANES       # full sublanes
    block_rows = min(max_block_rows, rows)
    rows = pl.cdiv(rows, block_rows) * block_rows     # whole number of blocks
    padded_total = rows * _LANES
    flat = jnp.pad(x.reshape(-1), (0, padded_total - total))
    return flat.reshape(rows, _LANES), block_rows, total


# --------------------------------------------------------------------------
# Kernel 1: per-block partial sums (sum, sum of squares).
# Grid axis is "parallel" (no resident accumulator) → megacore-friendly.
# --------------------------------------------------------------------------
def _partial_stats_kernel(x_ref, out_ref):
    x = x_ref[...].astype(jnp.float32)
    out_ref[0, 0] = jnp.sum(x)
    out_ref[0, 1] = jnp.sum(x * x)


def _partial_stats(x2d, block_rows):
    rows, lanes = x2d.shape
    num_blocks = rows // block_rows
    return pl.pallas_call(
        _partial_stats_kernel,
        out_shape=jax.ShapeDtypeStruct((num_blocks, 2), jnp.float32),
        grid_spec=pltpu.PrefetchScalarGridSpec(
            num_scalar_prefetch=0,
            grid=(num_blocks,),
            in_specs=[pl.BlockSpec((block_rows, lanes), lambda i: (i, 0))],
            out_specs=pl.BlockSpec((1, 2), lambda i: (i, 0),
                                   memory_space=pltpu.SMEM),
        ),
        compiler_params=pltpu.CompilerParams(
            dimension_semantics=("parallel",),
            vmem_limit_bytes=_VMEM_LIMIT),
    )(x2d)


def _finalize_stats(partials, total_n):
    # Tiny reduction (num_blocks x 2) + scalar math: cheap plain-JAX epilogue.
    s = jnp.sum(partials[:, 0])
    ss = jnp.sum(partials[:, 1])
    n = jnp.float32(total_n)
    mean = s / n
    # torch.std default: unbiased (ddof=1)
    var = (ss - n * mean * mean) / jnp.maximum(n - 1.0, 1.0)
    inv_std = jax.lax.rsqrt(var)
    return jnp.stack([mean, inv_std]).astype(jnp.float32)


# --------------------------------------------------------------------------
# Kernel 2: elementwise standardize  y = x * inv_std - mean * inv_std
# Stats arrive via scalar prefetch (SMEM); lane/sublane-dense blocks.
# --------------------------------------------------------------------------
def _standardize_kernel(stats_ref, x_ref, o_ref):
    inv_std = stats_ref[1]
    shift = stats_ref[0] * inv_std
    o_ref[...] = (x_ref[...].astype(jnp.float32) * inv_std - shift).astype(o_ref.dtype)


def _standardize(x2d, stats, block_rows):
    rows, lanes = x2d.shape
    num_blocks = rows // block_rows
    return pl.pallas_call(
        _standardize_kernel,
        out_shape=jax.ShapeDtypeStruct((rows, lanes), x2d.dtype),
        grid_spec=pltpu.PrefetchScalarGridSpec(
            num_scalar_prefetch=1,          # stats land in SMEM
            grid=(num_blocks,),
            in_specs=[pl.BlockSpec((block_rows, lanes),
                                   lambda i, stats: (i, 0))],
            out_specs=pl.BlockSpec((block_rows, lanes),
                                   lambda i, stats: (i, 0)),
        ),
        compiler_params=pltpu.CompilerParams(
            dimension_semantics=("parallel",),
            vmem_limit_bytes=_VMEM_LIMIT),
    )(stats, x2d)


# --------------------------------------------------------------------------
# NNModel "forward path": test_transform (Standardize) applied to the input.
# --------------------------------------------------------------------------
@jax.jit
def nnmodel_apply(x):
    x2d, block_rows, total = _to_lane_dense_2d(x)
    partials = _partial_stats(x2d, block_rows)
    stats = _finalize_stats(partials, total)
    y2d = _standardize(x2d, stats, block_rows)
    return y2d.reshape(-1)[:total].reshape(x.shape).astype(x.dtype)


if __name__ == "__main__":
    key = jax.random.PRNGKey(0)
    # small BCI-like signal batch: batch=8, channels=4, time=128
    x = 2.0 * jax.random.normal(key, (8, 4, 128), dtype=jnp.float32) + 1.5

    y = nnmodel_apply(x)
    y = jax.block_until_ready(y)

    # reference (matches torch.mean / torch.std(unbiased) + Standardize)
    x_np = np.asarray(x, dtype=np.float64)
    ref = (x_np - x_np.mean()) / x_np.std(ddof=1)
    np.testing.assert_allclose(np.asarray(y), ref, rtol=1e-5, atol=1e-5)

    print("KERNEL_OK")
</pallas_src>

<mosaic_0001>
module attributes {stable_mosaic.version = 11 : i64} {
  func.func @_partial_stats_kernel(%arg0: i32, %arg1: memref<32x128xf32, #tpu.memory_space<vmem>>, %arg2: memref<1x2xf32, #tpu.memory_space<smem>>) attributes {dimension_semantics = [#tpu.dimension_semantics<parallel>], iteration_bounds = array<i64: 1>, scalar_prefetch = 0 : i64, scratch_operands = 0 : i64, tpu.core_type = #tpu.core_type<tc>, window_params = [{transform_indices = @transform_0, window_bounds = array<i64: 32, 128>}, {transform_indices = @transform_1, window_bounds = array<i64: 1, 2>}]} {
    %c0 = arith.constant 0 : index
    %c0_0 = arith.constant 0 : index
    %0 = vector.load %arg1[%c0, %c0_0] : memref<32x128xf32, #tpu.memory_space<vmem>>, vector<32x128xf32>
    %1 = vector.shape_cast %0 : vector<32x128xf32> to vector<1x32x128xf32>
    %cst = arith.constant dense<0.000000e+00> : vector<1xf32>
    %2 = vector.multi_reduction <add>, %1, %cst [1, 2] : vector<1x32x128xf32> to vector<1xf32>
    %3 = vector.shape_cast %2 : vector<1xf32> to vector<1x1x1xf32>
    %4 = vector.extract %3[0, 0, 0] : f32 from vector<1x1x1xf32>
    %c0_1 = arith.constant 0 : index
    %c0_2 = arith.constant 0 : index
    %5 = memref.load %arg2[%c0_1, %c0_2] : memref<1x2xf32, #tpu.memory_space<smem>>
    memref.store %4, %arg2[%c0_1, %c0_2] : memref<1x2xf32, #tpu.memory_space<smem>>
    %6 = arith.mulf %0, %0 : vector<32x128xf32>
    %7 = vector.shape_cast %6 : vector<32x128xf32> to vector<1x32x128xf32>
    %cst_3 = arith.constant dense<0.000000e+00> : vector<1xf32>
    %8 = vector.multi_reduction <add>, %7, %cst_3 [1, 2] : vector<1x32x128xf32> to vector<1xf32>
    %9 = vector.shape_cast %8 : vector<1xf32> to vector<1x1x1xf32>
    %10 = vector.extract %9[0, 0, 0] : f32 from vector<1x1x1xf32>
    %c0_4 = arith.constant 0 : index
    %c1 = arith.constant 1 : index
    %11 = memref.load %arg2[%c0_4, %c1] : memref<1x2xf32, #tpu.memory_space<smem>>
    memref.store %10, %arg2[%c0_4, %c1] : memref<1x2xf32, #tpu.memory_space<smem>>
    return
  }
  func.func @transform_0(%arg0: i32) -> (i32, i32) {
    %c0_i32 = arith.constant 0 : i32
    %c0_i32_0 = arith.constant 0 : i32
    return %arg0, %c0_i32 : i32, i32
  }
  func.func @transform_1(%arg0: i32) -> (i32, i32) {
    %c0_i32 = arith.constant 0 : i32
    %c0_i32_0 = arith.constant 0 : i32
    return %arg0, %c0_i32 : i32, i32
  }
}

module attributes {stable_mosaic.version = 11 : i64} {
  func.func @_standardize_kernel(%arg0: i32, %arg1: memref<2xf32, #tpu.memory_space<smem>>, %arg2: memref<32x128xf32, #tpu.memory_space<vmem>>, %arg3: memref<32x128xf32, #tpu.memory_space<vmem>>) attributes {dimension_semantics = [#tpu.dimension_semantics<parallel>], iteration_bounds = array<i64: 1>, scalar_prefetch = 1 : i64, scratch_operands = 0 : i64, tpu.core_type = #tpu.core_type<tc>, window_params = [{transform_indices = @transform_0, window_bounds = array<i64: 32, 128>}, {transform_indices = @transform_1, window_bounds = array<i64: 32, 128>}]} {
    %c1 = arith.constant 1 : index
    %0 = memref.load %arg1[%c1] : memref<2xf32, #tpu.memory_space<smem>>
    %c0 = arith.constant 0 : index
    %1 = memref.load %arg1[%c0] : memref<2xf32, #tpu.memory_space<smem>>
    %2 = arith.mulf %1, %0 : f32
    %c0_0 = arith.constant 0 : index
    %c0_1 = arith.constant 0 : index
    %3 = vector.load %arg2[%c0_0, %c0_1] : memref<32x128xf32, #tpu.memory_space<vmem>>, vector<32x128xf32>
    %4 = vector.broadcast %0 : f32 to vector<32x128xf32>
    %5 = arith.mulf %3, %4 : vector<32x128xf32>
    %6 = vector.broadcast %2 : f32 to vector<32x128xf32>
    %7 = arith.subf %5, %6 : vector<32x128xf32>
    %c0_2 = arith.constant 0 : index
    %c0_3 = arith.constant 0 : index
    %8 = vector.load %arg3[%c0_2, %c0_3] : memref<32x128xf32, #tpu.memory_space<vmem>>, vector<32x128xf32>
    tpu.vector_store %arg3[%c0_2, %c0_3], %7 {strides = array<i32>} : memref<32x128xf32, #tpu.memory_space<vmem>>, vector<32x128xf32>,
    return
  }
  func.func @transform_0(%arg0: i32, %arg1: memref<2xf32, #tpu.memory_space<smem>>) -> (i32, i32) {
    %c0_i32 = arith.constant 0 : i32
    %c0_i32_0 = arith.constant 0 : i32
    return %arg0, %c0_i32 : i32, i32
  }
  func.func @transform_1(%arg0: i32, %arg1: memref<2xf32, #tpu.memory_space<smem>>) -> (i32, i32) {
    %c0_i32 = arith.constant 0 : i32
    %c0_i32_0 = arith.constant 0 : i32
    return %arg0, %c0_i32 : i32, i32
  }
}

</mosaic_0001>

<llo_original>
// kernel: nnmodel_apply.2
$region0: #{nnmodel_apply.2}
  #allocation0 [shape = 'u32[]', space=smem, size = 0x4, offset = 0x4, fixed_abs, tag = 'smem constant byte address 0x4 - core index']
  #allocation1 [shape = 'u32[144,128]{1,0:T(1,128)}', space=vmem, size = 0x12000, scoped, tag = 'internal scratch']
  %s0 = inlined_call_operand.hbm [shape: f32[32,128], index: 0, kind: input, shape index: {}]
  %s1 = inlined_call_operand.vmem [shape: f32[1,2], index: 1, kind: output, shape index: {}]
  %s2 = sld [smem:[#allocation0]]
  $region18: #{nnmodel_apply.2} parent=0
    _
  %s4 = ssub.s32 1, %s2
  %s5 = scalar_select 0, %s4, %s2
  $region1: #{nnmodel_apply.2} parent=0
    #allocation2 [shape = 'u8[16384]{0}', space=vmem, size = 0x4000, scoped, tag = 'input window, operand 0, single buffered']
    #allocation3 [shape = 's32[1]{0}', space=sflag, size = 0x4, scoped, tag = 'scoped memory for nnmodel_apply.2']
    #allocation4 [shape = 's32[1]{0}', space=sflag, size = 0x4, scoped, tag = 'scoped memory for nnmodel_apply.2']
    #allocation5 [shape = 'u8[512]{0}', space=smem, size = 0x200, scoped, tag = 'output window, operand 0, single buffered']
    %6 = vsyncpa [#allocation3], 0
    %7 = vsyncpa [#allocation4], 0
    // Predicated region
    $region2: #{nnmodel_apply.2} parent=1 // pred_check
      _
    $region3: #{nnmodel_apply.2} parent=1 // pred_check_branch
      %9 = sbr.rel (0) target = $region5
    $region4: #{nnmodel_apply.2} parent=1 // pred_region
      %s11 = ssub.s32 512, 512
      %12 = vsyncadd [#allocation3], %s11
      %s13 = sshll.u32 [#allocation2], 4
      %s14 = int_to_ptr.vmem [resolvable:$true] %s13
      %19 = dma.hbm_to_vmem [thread:$0]  %s0, 512, %s14, [#allocation3], 128, 128, 8
    $region5: #{nnmodel_apply.2} parent=1 // pred_fallthru
      _
    // Predicated region
    $region6: #{nnmodel_apply.2} parent=1 // pred_check
      _
    $region7: #{nnmodel_apply.2} parent=1 // pred_check_branch
      %21 = sbr.rel (0) target = $region9
    $region8: #{nnmodel_apply.2} parent=1 // pred_region
      %22 = dma.done [#allocation3], 512
    $region9: #{nnmodel_apply.2} parent=1 // pred_fallthru
      _
    %v23 = vld [vmem:[#allocation2] sm:$0xff]
    %v24 = vld [vmem:[#allocation2 + $0x8] sm:$0xff]
    %v25 = vld [vmem:[#allocation2 + $0x10] sm:$0xff]
    %v26 = vld [vmem:[#allocation2 + $0x18] sm:$0xff]
    %v27 = vadd.f32 %v23, %v24
    %v28 = vadd.f32 %v27, %v25
    %v29 = vadd.f32 %v28, %v26
    %30 = vadd.xlane.f32.xlu0 %v29
    %v31 = vpop.xlane.xlu0 %30
    %v32 = vrot.slane %v31, 4
    %v33 = vadd.f32 %v31, %v32
    %v34 = vrot.slane %v33, 2
    %v35 = vadd.f32 %v33, %v34
    %v36 = vrot.slane %v35, 1
    %v37 = vadd.f32 %v35, %v36
    %s38 = vtos %v37
    %s39 = scalar_lea.smem [#allocation5], 0
    %40 = sst [smem:[%s39]] %s38
    %v41 = vmul.f32 %v23, %v23
    %v42 = vmul.f32 %v24, %v24
    %v43 = vmul.f32 %v25, %v25
    %v44 = vmul.f32 %v26, %v26
    %v45 = vadd.f32 %v41, %v42
    %v46 = vadd.f32 %v45, %v43
    %v47 = vadd.f32 %v46, %v44
    %48 = vadd.xlane.f32.xlu0 %v47
    %v49 = vpop.xlane.xlu0 %48
    %v50 = vrot.slane %v49, 4
    %v51 = vadd.f32 %v49, %v50
    %v52 = vrot.slane %v51, 2
    %v53 = vadd.f32 %v51, %v52
    %v54 = vrot.slane %v53, 1
    %v55 = vadd.f32 %v53, %v54
    %s56 = vtos %v55
    %s57 = scalar_lea.smem [#allocation5], 1
    %58 = sst [smem:[%s57]] %s56
    // Predicated region
    $region10: #{nnmodel_apply.2} parent=1 // pred_check
      _
    $region11: #{nnmodel_apply.2} parent=1 // pred_check_branch
      %60 = sbr.rel (0) target = $region13
    $region12: #{nnmodel_apply.2} parent=1 // pred_region
      %s62 = ssub.s32 16, 16
      %63 = vsyncadd [#allocation4], %s62
      %s65 = sshll.u32 %s1, 4
      %s66 = int_to_ptr.vmem [resolvable:$true] %s65
      %68 = dma.smem_to_vmem [#allocation5], 16, %s66, [#allocation4]
    $region13: #{nnmodel_apply.2} parent=1 // pred_fallthru
      _
    // Predicated region
    $region14: #{nnmodel_apply.2} parent=1 // pred_check
      _
    $region15: #{nnmodel_apply.2} parent=1 // pred_check_branch
      %70 = sbr.rel (0) target = $region17
    $region16: #{nnmodel_apply.2} parent=1 // pred_region
      %71 = dma.done [#allocation4], 16
    $region17: #{nnmodel_apply.2} parent=1 // pred_fallthru
      _
    %72 = sfence
    %73 = vsyncpa [#allocation3], 1
    %74 = vsyncpa [#allocation4], 1

// kernel: nnmodel_apply.3
$region0: #{nnmodel_apply.3}
  #allocation0 [shape = 'u32[]', space=smem, size = 0x4, offset = 0x4, fixed_abs, tag = 'smem constant byte address 0x4 - core index']
  #allocation1 [shape = 'u32[144,128]{1,0:T(1,128)}', space=vmem, size = 0x12000, scoped, tag = 'internal scratch']
  #allocation2 [shape = 's32[1]{0}', space=sflag, size = 0x4, scoped, tag = 'scoped memory for nnmodel_apply.3']
  #allocation3 [shape = 'u8[512]{0}', space=smem, size = 0x200, scoped, tag = 'prefetched SMEM operand 0']
  %s0 = inlined_call_operand.vmem [shape: f32[2], index: 0, kind: input, shape index: {}]
  %s1 = inlined_call_operand.vmem [shape: f32[32,128], index: 1, kind: input, shape index: {}]
  %s2 = inlined_call_operand.hbm [shape: f32[32,128], index: 2, kind: output, shape index: {}]
  %s3 = sld [smem:[#allocation0]]
  $region14: #{nnmodel_apply.3} parent=0
    _
  %s5 = ssub.s32 1, %s3
  %s6 = scalar_select 0, %s5, %s3
  %s7 = sshll.u32 %s0, 4
  %s8 = int_to_ptr.vmem [resolvable:$true] %s7
  %10 = dma.vmem_to_smem %s8, 16, [#allocation3], [#allocation2]
  %11 = dma.done [#allocation2], 16
  %12 = sfence
  $region1: #{nnmodel_apply.3} parent=0
    #allocation4 [shape = 'u8[16384]{0}', space=vmem, size = 0x4000, scoped, tag = 'output window, operand 0, single buffered']
    #allocation5 [shape = 's32[1]{0}', space=sflag, size = 0x4, scoped, tag = 'scoped memory for nnmodel_apply.3']
    %13 = vsyncpa [#allocation5], 0
    // Predicated region
    $region2: #{nnmodel_apply.3} parent=1 // pred_check
      _
    $region3: #{nnmodel_apply.3} parent=1 // pred_check_branch
      %15 = sbr.rel (0) target = $region5
    $region4: #{nnmodel_apply.3} parent=1 // pred_region
      _
    $region5: #{nnmodel_apply.3} parent=1 // pred_fallthru
      _
    %s16 = sld [smem:[#allocation3 + $0x1]]
    %s17 = sld [smem:[#allocation3]]
    %s18 = smul.f32 %s17, %s16
    %v19 = vld [vmem:[%s1] sm:$0xff]
    %v20 = vld [vmem:[%s1 + $0x8] sm:$0xff]
    %v21 = vld [vmem:[%s1 + $0x10] sm:$0xff]
    %v22 = vld [vmem:[%s1 + $0x18] sm:$0xff]
    %v23 = vstv %s16
    %v24 = vmul.f32 %v19, %v23
    %v25 = vmul.f32 %v20, %v23
    %v26 = vmul.f32 %v21, %v23
    %v27 = vmul.f32 %v22, %v23
    %v28 = vstv %s18
    %v29 = vsub.f32 %v24, %v28
    %v30 = vsub.f32 %v25, %v28
    %v31 = vsub.f32 %v26, %v28
    %v32 = vsub.f32 %v27, %v28
    %33 = vst [vmem:[#allocation4] sm:$0xff] %v29
    %34 = vst [vmem:[#allocation4 + $0x8] sm:$0xff] %v30
    %35 = vst [vmem:[#allocation4 + $0x10] sm:$0xff] %v31
    %36 = vst [vmem:[#allocation4 + $0x18] sm:$0xff] %v32
    // Predicated region
    $region6: #{nnmodel_apply.3} parent=1 // pred_check
      _
    $region7: #{nnmodel_apply.3} parent=1 // pred_check_branch
      %38 = sbr.rel (0) target = $region9
    $region8: #{nnmodel_apply.3} parent=1 // pred_region
      %s40 = ssub.s32 512, 512
      %41 = vsyncadd [#allocation5], %s40
      %s42 = sshll.u32 [#allocation4], 4
      %s43 = int_to_ptr.vmem [resolvable:$true] %s42
      %48 = dma.vmem_to_hbm [thread:$0]  %s43, 512, %s2, [#allocation5], 128, 128, 8
    $region9: #{nnmodel_apply.3} parent=1 // pred_fallthru
      _
    // Predicated region
    $region10: #{nnmodel_apply.3} parent=1 // pred_check
      _
    $region11: #{nnmodel_apply.3} parent=1 // pred_check_branch
      %50 = sbr.rel (0) target = $region13
    $region12: #{nnmodel_apply.3} parent=1 // pred_region
      %51 = dma.done [#allocation5], 512
    $region13: #{nnmodel_apply.3} parent=1 // pred_fallthru
      _
    %52 = vsyncpa [#allocation5], 1

</llo_original>
